<compile_context>
chip_gen: v5e
topology: v5e:2x2
jax: 0.10.0
libtpu: 0.0.40
codegen_flags: <defaults>
</compile_context>

<pallas_src>
import jax
import jax.numpy as jnp
from jax.experimental import pallas as pl
from jax.experimental.pallas import tpu as pltpu


def hierarchy_similarity_loss(emb0, emb1, labels, *, tile_b=512, num_partials=2):
    """loss = MSE(cos_sim(emb0, emb1), labels[:, 0]) as a tiled Pallas reduction."""
    B, D = emb0.shape
    lab = labels[:, 0].reshape(B, 1).astype(jnp.float32)

    # --- tile / grid geometry -------------------------------------------------
    min_itemsize = min(emb0.dtype.itemsize, emb1.dtype.itemsize)
    align = {4: 8, 2: 16, 1: 32}.get(int(min_itemsize), 8)   # sublane packing
    tile_b_eff = min(int(tile_b), B)
    if tile_b_eff != B:
        tile_b_eff = max(align, (tile_b_eff // align) * align)
    num_tiles = pl.cdiv(B, tile_b_eff)

    # Largest partial count <= num_partials that divides num_tiles, so the 2-D
    # grid covers the tile range exactly. Padded rows of the last (edge) tile
    # are masked inside the kernel.
    p_eff = max(1, min(int(num_partials), num_tiles))
    while num_tiles % p_eff != 0:
        p_eff -= 1
    tiles_per_partial = num_tiles // p_eff

    inv_b = jnp.float32(1.0 / B)

    def kernel(e0_ref, e1_ref, lab_ref, out_ref, acc_ref):
        p = pl.program_id(0)
        t = pl.program_id(1)
        nt = pl.num_programs(1)

        @pl.when(t == 0)
        def _init():
            acc_ref[...] = jnp.zeros_like(acc_ref)

        e0 = e0_ref[...].astype(jnp.float32)              # (TILE_B, D)
        e1 = e1_ref[...].astype(jnp.float32)              # (TILE_B, D)
        lab_t = lab_ref[...]                              # (TILE_B, 1) f32

        dot = jnp.sum(e0 * e1, axis=-1, keepdims=True)    # (TILE_B, 1)
        n0sq = jnp.sum(e0 * e0, axis=-1, keepdims=True)
        n1sq = jnp.sum(e1 * e1, axis=-1, keepdims=True)

        eps = jnp.float32(1e-8)
        # torch.cosine_similarity: dot / sqrt(clamp_min(|e0|^2 * |e1|^2, eps^2)).
        cos = dot * jax.lax.rsqrt(jnp.maximum(n0sq * n1sq, eps * eps))

        diff = cos - lab_t
        sq = diff * diff                                  # (TILE_B, 1)

        # Mask rows past the true batch size (edge-block padding).
        row_start = (p * tiles_per_partial + t) * tile_b_eff
        row_ids = jax.lax.broadcasted_iota(jnp.int32, sq.shape, 0)
        sq = jnp.where(row_start + row_ids < B, sq, jnp.float32(0.0))

        acc_ref[...] += jnp.sum(sq, keepdims=True)

        @pl.when(t == nt - 1)
        def _finalize():
            out_ref[...] = acc_ref[...].reshape(out_ref.shape)

    # --- VMEM budget: double-buffered input tiles + headroom, capped < v7x 64MiB
    in_bytes = tile_b_eff * (D * (emb0.dtype.itemsize + emb1.dtype.itemsize) + 4)
    vmem_limit = int(min(max(4 * in_bytes + (8 << 20), 32 << 20), 48 << 20))

    partials = pl.pallas_call(
        kernel,
        out_shape=jax.ShapeDtypeStruct((p_eff, 1, 1), jnp.float32),
        grid=(p_eff, tiles_per_partial),
        in_specs=[
            pl.BlockSpec((tile_b_eff, D), lambda p, t: (p * tiles_per_partial + t, 0)),
            pl.BlockSpec((tile_b_eff, D), lambda p, t: (p * tiles_per_partial + t, 0)),
            pl.BlockSpec((tile_b_eff, 1), lambda p, t: (p * tiles_per_partial + t, 0)),
        ],
        out_specs=pl.BlockSpec((1, 1, 1), lambda p, t: (p, 0, 0)),
        scratch_shapes=[pltpu.VMEM((1, 1), jnp.float32)],
        compiler_params=pltpu.CompilerParams(
            dimension_semantics=("parallel", "arbitrary"),
            vmem_limit_bytes=vmem_limit,
        ),
    )(emb0, emb1, lab)

    # Tiny epilogue: combine per-core partial sums, apply MSE mean (1/B).
    return jnp.sum(partials) * inv_b


def _reference_loss(emb0, emb1, labels):
    """Plain-JAX reference matching torch.cosine_similarity + MSELoss."""
    e0 = emb0.astype(jnp.float32)
    e1 = emb1.astype(jnp.float32)
    eps = jnp.float32(1e-8)
    dot = jnp.sum(e0 * e1, axis=-1)
    n0 = jnp.linalg.norm(e0, axis=-1)
    n1 = jnp.linalg.norm(e1, axis=-1)
    cos = dot / jnp.maximum(n0 * n1, eps)
    lab = labels[:, 0].astype(jnp.float32)
    return jnp.mean((cos - lab) ** 2)


if __name__ == "__main__":
    key = jax.random.PRNGKey(0)
    k_e0, k_e1, k_lab = jax.random.split(key, 3)

    # Small shapes: a batch of sentence-pair embeddings from the (external)
    # SentenceTransformer. B is deliberately NOT a multiple of the test tile so
    # the masking / edge-block path is exercised.
    B, D = 50, 256
    emb0 = jax.random.normal(k_e0, (B, D), dtype=jnp.float32)
    emb1 = jax.random.normal(k_e1, (B, D), dtype=jnp.float32)
    labels = jax.random.uniform(k_lab, (B, 2), dtype=jnp.float32)  # labels[:, 0] used

    # f32 path, multi-step grid: tile_b=16 -> 4 tiles = 2 partials x 2 tiles.
    loss = hierarchy_similarity_loss(emb0, emb1, labels, tile_b=16, num_partials=2)
    loss = jax.block_until_ready(loss)
    ref = _reference_loss(emb0, emb1, labels)
    assert jnp.allclose(loss, ref, atol=1e-5, rtol=1e-5), (loss, ref)

    # bf16-on-the-wire path (half the HBM bytes moved; f32 accumulation in-kernel).
    emb0_bf = emb0.astype(jnp.bfloat16)
    emb1_bf = emb1.astype(jnp.bfloat16)
    loss_bf = jax.block_until_ready(
        hierarchy_similarity_loss(emb0_bf, emb1_bf, labels, tile_b=16, num_partials=2))
    ref_bf = _reference_loss(emb0_bf, emb1_bf, labels)
    assert jnp.allclose(loss_bf, ref_bf, atol=1e-4, rtol=1e-4), (loss_bf, ref_bf)

    # Default (large-tile) config degenerates to a single tile / single partial.
    loss_d = jax.block_until_ready(hierarchy_similarity_loss(emb0, emb1, labels))
    assert jnp.allclose(loss_d, ref, atol=1e-5, rtol=1e-5), (loss_d, ref)

    print("KERNEL_OK")
</pallas_src>

<mosaic_0001>
module attributes {stable_mosaic.version = 11 : i64} {
  func.func @kernel(%arg0: i32, %arg1: i32, %arg2: memref<16x256xf32, #tpu.memory_space<vmem>>, %arg3: memref<16x256xf32, #tpu.memory_space<vmem>>, %arg4: memref<16x1xf32, #tpu.memory_space<vmem>>, %arg5: memref<1x1x1xf32, #tpu.memory_space<vmem>>, %arg6: memref<1x1xf32, #tpu.memory_space<vmem>>) attributes {dimension_semantics = [#tpu.dimension_semantics<parallel>, #tpu.dimension_semantics<arbitrary>], iteration_bounds = array<i64: 2, 2>, scalar_prefetch = 0 : i64, scratch_operands = 1 : i64, tpu.core_type = #tpu.core_type<tc>, window_params = [{transform_indices = @transform_0, window_bounds = array<i64: 16, 256>}, {transform_indices = @transform_1, window_bounds = array<i64: 16, 256>}, {transform_indices = @transform_2, window_bounds = array<i64: 16, 1>}, {transform_indices = @transform_3, window_bounds = array<i64: 1, 1, 1>}]} {
    %c0_i32 = arith.constant 0 : i32
    %0 = arith.cmpi eq, %arg1, %c0_i32 : i32
    %1 = arith.extui %0 : i1 to i32
    %c0_i32_0 = arith.constant 0 : i32
    %2 = arith.cmpi ne, %1, %c0_i32_0 : i32
    scf.if %2 {
      %cst_17 = arith.constant 0.000000e+00 : f32
      %44 = vector.broadcast %cst_17 : f32 to vector<1x1xf32>
      %c0_18 = arith.constant 0 : index
      %c0_19 = arith.constant 0 : index
      %45 = vector.load %arg6[%c0_18, %c0_19] : memref<1x1xf32, #tpu.memory_space<vmem>>, vector<1x1xf32>
      tpu.vector_store %arg6[%c0_18, %c0_19], %44 {strides = array<i32>} : memref<1x1xf32, #tpu.memory_space<vmem>>, vector<1x1xf32>,
    } else {
    }
    %c0 = arith.constant 0 : index
    %c0_1 = arith.constant 0 : index
    %3 = vector.load %arg2[%c0, %c0_1] : memref<16x256xf32, #tpu.memory_space<vmem>>, vector<16x256xf32>
    %c0_2 = arith.constant 0 : index
    %c0_3 = arith.constant 0 : index
    %4 = vector.load %arg3[%c0_2, %c0_3] : memref<16x256xf32, #tpu.memory_space<vmem>>, vector<16x256xf32>
    %c0_4 = arith.constant 0 : index
    %c0_5 = arith.constant 0 : index
    %5 = vector.load %arg4[%c0_4, %c0_5] : memref<16x1xf32, #tpu.memory_space<vmem>>, vector<16x1xf32>
    %6 = arith.mulf %3, %4 : vector<16x256xf32>
    %cst = arith.constant dense<0.000000e+00> : vector<16xf32>
    %7 = vector.multi_reduction <add>, %6, %cst [1] : vector<16x256xf32> to vector<16xf32>
    %8 = vector.shape_cast %7 : vector<16xf32> to vector<16x1xf32>
    %9 = arith.mulf %3, %3 : vector<16x256xf32>
    %cst_6 = arith.constant dense<0.000000e+00> : vector<16xf32>
    %10 = vector.multi_reduction <add>, %9, %cst_6 [1] : vector<16x256xf32> to vector<16xf32>
    %11 = vector.shape_cast %10 : vector<16xf32> to vector<16x1xf32>
    %12 = arith.mulf %4, %4 : vector<16x256xf32>
    %cst_7 = arith.constant dense<0.000000e+00> : vector<16xf32>
    %13 = vector.multi_reduction <add>, %12, %cst_7 [1] : vector<16x256xf32> to vector<16xf32>
    %14 = vector.shape_cast %13 : vector<16xf32> to vector<16x1xf32>
    %15 = arith.mulf %11, %14 : vector<16x1xf32>
    %cst_8 = arith.constant 9.99999993E-9 : f32
    %cst_9 = arith.constant 9.99999993E-9 : f32
    %16 = arith.mulf %cst_8, %cst_9 : f32
    %17 = vector.broadcast %16 : f32 to vector<16x1xf32>
    %18 = arith.maximumf %15, %17 : vector<16x1xf32>
    %19 = math.rsqrt %18 : vector<16x1xf32>
    %20 = arith.mulf %8, %19 : vector<16x1xf32>
    %21 = arith.subf %20, %5 : vector<16x1xf32>
    %22 = arith.mulf %21, %21 : vector<16x1xf32>
    %c2_i32 = arith.constant 2 : i32
    %23 = arith.muli %arg0, %c2_i32 : i32
    %24 = arith.addi %23, %arg1 : i32
    %c16_i32 = arith.constant 16 : i32
    %25 = arith.muli %24, %c16_i32 : i32
    %26 = tpu.iota {dimensions = array<i32: 0>} : vector<16x1xi32>
    %27 = vector.broadcast %25 : i32 to vector<16x1xi32>
    %28 = arith.addi %27, %26 : vector<16x1xi32>
    %c50_i32 = arith.constant 50 : i32
    %29 = vector.broadcast %c50_i32 : i32 to vector<16x1xi32>
    %30 = arith.cmpi slt, %28, %29 : vector<16x1xi32>
    %cst_10 = arith.constant 0.000000e+00 : f32
    %31 = vector.broadcast %cst_10 : f32 to vector<16x1xf32>
    %32 = arith.select %30, %22, %31 : vector<16x1xi1>, vector<16x1xf32>
    %c0_11 = arith.constant 0 : index
    %c0_12 = arith.constant 0 : index
    %33 = vector.load %arg6[%c0_11, %c0_12] : memref<1x1xf32, #tpu.memory_space<vmem>>, vector<1x1xf32>
    %34 = vector.shape_cast %32 : vector<16x1xf32> to vector<1x16x1xf32>
    %cst_13 = arith.constant dense<0.000000e+00> : vector<1xf32>
    %35 = vector.multi_reduction <add>, %34, %cst_13 [1, 2] : vector<1x16x1xf32> to vector<1xf32>
    %36 = vector.shape_cast %35 : vector<1xf32> to vector<1x1x1xf32>
    %37 = vector.extract %36[0, 0, 0] : f32 from vector<1x1x1xf32>
    %38 = vector.broadcast %37 : f32 to vector<1x1xf32>
    %39 = arith.addf %33, %38 : vector<1x1xf32>
    %c0_14 = arith.constant 0 : index
    %c0_15 = arith.constant 0 : index
    %40 = vector.load %arg6[%c0_14, %c0_15] : memref<1x1xf32, #tpu.memory_space<vmem>>, vector<1x1xf32>
    tpu.vector_store %arg6[%c0_14, %c0_15], %39 {strides = array<i32>} : memref<1x1xf32, #tpu.memory_space<vmem>>, vector<1x1xf32>,
    %c1_i32 = arith.constant 1 : i32
    %41 = arith.cmpi eq, %arg1, %c1_i32 : i32
    %42 = arith.extui %41 : i1 to i32
    %c0_i32_16 = arith.constant 0 : i32
    %43 = arith.cmpi ne, %42, %c0_i32_16 : i32
    scf.if %43 {
      %c0_17 = arith.constant 0 : index
      %c0_18 = arith.constant 0 : index
      %44 = vector.load %arg6[%c0_17, %c0_18] : memref<1x1xf32, #tpu.memory_space<vmem>>, vector<1x1xf32>
      %45 = vector.shape_cast %44 : vector<1x1xf32> to vector<1x1x1xf32>
      %c0_19 = arith.constant 0 : index
      %c0_20 = arith.constant 0 : index
      %c0_21 = arith.constant 0 : index
      %46 = vector.load %arg5[%c0_19, %c0_20, %c0_21] : memref<1x1x1xf32, #tpu.memory_space<vmem>>, vector<1x1x1xf32>
      tpu.vector_store %arg5[%c0_19, %c0_20, %c0_21], %45 {strides = array<i32>} : memref<1x1x1xf32, #tpu.memory_space<vmem>>, vector<1x1x1xf32>,
    } else {
    }
    return
  }
  func.func @transform_0(%arg0: i32, %arg1: i32) -> (i32, i32) {
    %c2_i32 = arith.constant 2 : i32
    %0 = arith.muli %arg0, %c2_i32 : i32
    %1 = arith.addi %0, %arg1 : i32
    %c0_i32 = arith.constant 0 : i32
    %c0_i32_0 = arith.constant 0 : i32
    return %1, %c0_i32 : i32, i32
  }
  func.func @transform_1(%arg0: i32, %arg1: i32) -> (i32, i32) {
    %c2_i32 = arith.constant 2 : i32
    %0 = arith.muli %arg0, %c2_i32 : i32
    %1 = arith.addi %0, %arg1 : i32
    %c0_i32 = arith.constant 0 : i32
    %c0_i32_0 = arith.constant 0 : i32
    return %1, %c0_i32 : i32, i32
  }
  func.func @transform_2(%arg0: i32, %arg1: i32) -> (i32, i32) {
    %c2_i32 = arith.constant 2 : i32
    %0 = arith.muli %arg0, %c2_i32 : i32
    %1 = arith.addi %0, %arg1 : i32
    %c0_i32 = arith.constant 0 : i32
    %c0_i32_0 = arith.constant 0 : i32
    return %1, %c0_i32 : i32, i32
  }
  func.func @transform_3(%arg0: i32, %arg1: i32) -> (i32, i32, i32) {
    %c0_i32 = arith.constant 0 : i32
    %c0_i32_0 = arith.constant 0 : i32
    %c0_i32_1 = arith.constant 0 : i32
    return %arg0, %c0_i32, %c0_i32_0 : i32, i32, i32
  }
}

</mosaic_0001>

<llo_original>
// kernel: tpu_custom_call.1
$region0: #{tpu_custom_call.1}
  #allocation0 [shape = 'u32[]', space=smem, size = 0x4, offset = 0x4, fixed_abs, tag = 'smem constant byte address 0x4 - core index']
  #allocation1 [shape = 'u32[72,128]{1,0:T(1,128)}', space=vmem, size = 0x9000, scoped, tag = 'internal scratch']
  #allocation2 [shape = 'f32[1,1]{1,0:T(1,128)}', space=vmem, size = 0x200, scoped, tag = 'scratch operand']
  %s0 = inlined_call_operand.hbm [shape: f32[50,256], index: 0, kind: input, shape index: {}]
  %s1 = inlined_call_operand.hbm [shape: f32[50,256], index: 1, kind: input, shape index: {}]
  %s2 = inlined_call_operand.vmem [shape: f32[50,1], index: 2, kind: input, shape index: {}]
  %s3 = inlined_call_operand.vmem [shape: f32[2,1,1], index: 3, kind: output, shape index: {}]
  %s4 = sld [smem:[#allocation0]]
  $region61: #{tpu_custom_call.1} parent=0
    _
  %s6 = ssub.s32 1, %s4
  %s7 = scalar_select 0, %s6, %s4
  $region1: #{tpu_custom_call.1} parent=0
    #allocation3 [shape = 'u8[32768]{0}', space=vmem, size = 0x8000, scoped, tag = 'input window, operand 0']
    #allocation4 [shape = 's32[2]{0}', space=sflag, size = 0x8, scoped, tag = 'scoped memory for tpu_custom_call.1']
    #allocation5 [shape = 'u8[32768]{0}', space=vmem, size = 0x8000, scoped, tag = 'input window, operand 1']
    #allocation6 [shape = 's32[2]{0}', space=sflag, size = 0x8, scoped, tag = 'scoped memory for tpu_custom_call.1']
    %8 = vsyncpa [#allocation4], 0
    %s9 = scalar_lea.sflag [#allocation4], 1
    %10 = vsyncpa %s9, 0
    %11 = vsyncpa [#allocation6], 0
    %s12 = scalar_lea.sflag [#allocation6], 1
    %13 = vsyncpa %s12, 0
    loop: start=0, step=1, limit=6
    $region2: #{tpu_custom_call.1} parent=1 // loop_pre_header
      _
    $region3: #{tpu_custom_call.1} parent=1 // loop_header
      %s15 = sphi 0, %s19
      %p16 = scmp.ge.s32.totalorder %s15, 6
      %s22 = sphi 0, %s34
      %s23 = sphi 0, %s30
      %s24 = sphi 0, %s22
      %s25 = sphi 0, %s23
      %s26 = sphi 0, %s24
      %s27 = sphi 0, %s25
      %s41 = sphi 0, %s43
      %s44 = sphi 0, %s41
      %s45 = sphi 0, %s44
      %s61 = sphi 0, %s45
      %s71 = sphi 0, %s73
      %s74 = sphi 0, %s71
      %s75 = sphi 0, %s74
      %s91 = sphi 0, %s75
      %s101 = sphi 0, %s103
      %s104 = sphi 0, %s101
      %s105 = sphi 0, %s104
      %s121 = sphi 0, %s105
      %s127 = sphi 0, %s129
      %s130 = sphi 0, %s127
      %s131 = sphi 0, %s130
      %s147 = sphi 0, %s131
    $region4: #{tpu_custom_call.1} parent=1 // loop_header_branch
      %18 = sbr.rel (%p16) target = $region8
    $region5: #{tpu_custom_call.1} parent=1 // loop_body
      %s20 = ssub.s32 %s15, 1
      %s21 = ssub.s32 %s15, 2
      %s28 = sadd.s32 1, %s23
      %p29 = scmp.ge.s32.totalorder %s28, 2
      %s30 = scalar_select %p29, 0, %s28
      %s31 = sadd.s32 1, %s22
      %s32 = scalar_select %p29, %s31, %s22
      %p33 = scmp.ge.s32.totalorder %s32, 2
      %s34 = scalar_select %p33, 0, %s32
      %s35 = smul.u32 %s22, 2
      %s36 = sadd.s32 %s35, %s23
      %s37 = smul.u32 %s34, 2
      %s38 = sadd.s32 %s37, %s30
      %s39 = ssub.s32 %s36, %s38
      %p40 = scmp.eq.s32.totalorder %s39, 0
      %s42 = sadd.s32 %s41, 1
      %s43 = scalar_select %p40, %s41, %s42
      %p46 = pneg %p40
      %p47 = scmp.eq.s32.totalorder %s15, 3
      %p48 = por %p46, %p47
      %p49 = scmp.ne.s32.totalorder %s41, %s44
      %p50 = scmp.eq.s32.totalorder %s15, 0
      %p51 = por %p49, %p50
      %p52 = scmp.ne.s32.totalorder %s41, %s44
      %p53 = scmp.eq.s32.totalorder %s20, 3
      %p54 = por %p52, %p53
      %p55 = scmp.ne.s32.totalorder %s44, %s45
      %p56 = scmp.eq.s32.totalorder %s20, 0
      %p57 = por %p55, %p56
      %p58 = scmp.ne.s32.totalorder %s44, %s45
      %p59 = scmp.eq.s32.totalorder %s21, 3
      %p60 = por %p58, %p59
      %p62 = scmp.ne.s32.totalorder %s45, %s61
      %p63 = scmp.eq.s32.totalorder %s21, 0
      %p64 = por %p62, %p63
      %s65 = smul.u32 %s22, 2
      %s66 = sadd.s32 %s65, %s23
      %s67 = smul.u32 %s34, 2
      %s68 = sadd.s32 %s67, %s30
      %s69 = ssub.s32 %s66, %s68
      %p70 = scmp.eq.s32.totalorder %s69, 0
      %s72 = sadd.s32 %s71, 1
      %s73 = scalar_select %p70, %s71, %s72
      %p76 = pneg %p70
      %p77 = scmp.eq.s32.totalorder %s15, 3
      %p78 = por %p76, %p77
      %p79 = scmp.ne.s32.totalorder %s71, %s74
      %p80 = scmp.eq.s32.totalorder %s15, 0
      %p81 = por %p79, %p80
      %p82 = scmp.ne.s32.totalorder %s71, %s74
      %p83 = scmp.eq.s32.totalorder %s20, 3
      %p84 = por %p82, %p83
      %p85 = scmp.ne.s32.totalorder %s74, %s75
      %p86 = scmp.eq.s32.totalorder %s20, 0
      %p87 = por %p85, %p86
      %p88 = scmp.ne.s32.totalorder %s74, %s75
      %p89 = scmp.eq.s32.totalorder %s21, 3
      %p90 = por %p88, %p89
      %p92 = scmp.ne.s32.totalorder %s75, %s91
      %p93 = scmp.eq.s32.totalorder %s21, 0
      %p94 = por %p92, %p93
      %s95 = smul.u32 %s22, 2
      %s96 = sadd.s32 %s95, %s23
      %s97 = smul.u32 %s34, 2
      %s98 = sadd.s32 %s97, %s30
      %s99 = ssub.s32 %s96, %s98
      %p100 = scmp.eq.s32.totalorder %s99, 0
      %s102 = sadd.s32 %s101, 1
      %s103 = scalar_select %p100, %s101, %s102
      %p106 = pneg %p100
      %p107 = scmp.eq.s32.totalorder %s15, 3
      %p108 = por %p106, %p107
      %p109 = scmp.ne.s32.totalorder %s101, %s104
      %p110 = scmp.eq.s32.totalorder %s15, 0
      %p111 = por %p109, %p110
      %p112 = scmp.ne.s32.totalorder %s101, %s104
      %p113 = scmp.eq.s32.totalorder %s20, 3
      %p114 = por %p112, %p113
      %p115 = scmp.ne.s32.totalorder %s104, %s105
      %p116 = scmp.eq.s32.totalorder %s20, 0
      %p117 = por %p115, %p116
      %p118 = scmp.ne.s32.totalorder %s104, %s105
      %p119 = scmp.eq.s32.totalorder %s21, 3
      %p120 = por %p118, %p119
      %p122 = scmp.ne.s32.totalorder %s105, %s121
      %p123 = scmp.eq.s32.totalorder %s21, 0
      %p124 = por %p122, %p123
      %s125 = ssub.s32 %s22, %s34
      %p126 = scmp.eq.s32.totalorder %s125, 0
      %s128 = sadd.s32 %s127, 1
      %s129 = scalar_select %p126, %s127, %s128
      %p132 = pneg %p126
      %p133 = scmp.eq.s32.totalorder %s15, 3
      %p134 = por %p132, %p133
      %p135 = scmp.ne.s32.totalorder %s127, %s130
      %p136 = scmp.eq.s32.totalorder %s15, 0
      %p137 = por %p135, %p136
      %p138 = scmp.ne.s32.totalorder %s127, %s130
      %p139 = scmp.eq.s32.totalorder %s20, 3
      %p140 = por %p138, %p139
      %p141 = scmp.ne.s32.totalorder %s130, %s131
      %p142 = scmp.eq.s32.totalorder %s20, 0
      %p143 = por %p141, %p142
      %p144 = scmp.ne.s32.totalorder %s130, %s131
      %p145 = scmp.eq.s32.totalorder %s21, 3
      %p146 = por %p144, %p145
      %p148 = scmp.ne.s32.totalorder %s131, %s147
      %p149 = scmp.eq.s32.totalorder %s21, 0
      %p150 = por %p148, %p149
      %p151 = scmp.le.s32.totalorder 1, %s15
      %p152 = scmp.lt.s32.totalorder %s15, 5
      %p153 = pnand %p151, %p152
      %p154 = pneg %p153
      // Predicated region
      $region9: #{tpu_custom_call.1} parent=5 // pred_check
        _
      $region10: #{tpu_custom_call.1} parent=5 // pred_check_branch
        %156 = sbr.rel (%p153) target = $region12
      $region11: #{tpu_custom_call.1} parent=5 // pred_region
        %s157 = ssub.s32 %s15, 1
      $region12: #{tpu_custom_call.1} parent=5 // pred_fallthru
        _
      %p158 = scmp.lt.s32.totalorder %s15, 4
      // Predicated region
      $region13: #{tpu_custom_call.1} parent=5 // pred_check
        %p159 = pneg %p158
      $region14: #{tpu_custom_call.1} parent=5 // pred_check_branch
        %161 = sbr.rel (%p159) target = $region16
      $region15: #{tpu_custom_call.1} parent=5 // pred_region
        // Predicated region
        $region17: #{tpu_custom_call.1} parent=15 // pred_check
          %p162 = pneg %p51
        $region18: #{tpu_custom_call.1} parent=15 // pred_check_branch
          %164 = sbr.rel (%p162) target = $region20
        $region19: #{tpu_custom_call.1} parent=15 // pred_region
          %s165 = sand.u32 %s41, 1
          %s166 = scalar_lea.sflag [#allocation4], %s165
          %s167 = sand.u32 %s41, 1
          %s168 = smul.addr %s167, 32
          %s169 = scalar_lea.vmem [#allocation3], %s168
          %s170 = smul.u32 %s22, 2
          %s171 = sadd.s32 %s170, %s23
          %s172 = smul.u32 2, %s171
          %s173 = ssub.s32 7, %s172
          %p174 = scmp.lt.s32.totalorder %s173, 2
          %s175 = scalar_select %p174, %s173, 2
          %s176 = smul.u32 8, %s175
          %s177 = smul.u32 %s176, 2
          %s178 = ssub.s32 32, %s177
          %s179 = sshll.u32 %s178, 4
          %180 = vsyncadd %s166, %s179
          %p181 = scmp.ne.s32.totalorder 0, %s177
          %s182 = smul.addr %s172, 2
          %s183 = smul.addr %s182, 8
          %s184 = scalar_lea.hbm %s0, %s183
          %s185 = smul.u32 16, %s175
          %s186 = sshll.u32 %s184, 4
          %s187 = int_to_ptr.hbm [resolvable:$true] %s186
          %s188 = sshll.u32 %s169, 4
          %s189 = int_to_ptr.vmem [resolvable:$true] %s188
          %s190 = sshll.u32 %s185, 4
          %194 = dma.hbm_to_vmem [thread:$0]  (%p181), %s187, %s190, %s189, %s166, 256, 256, 16
        $region20: #{tpu_custom_call.1} parent=15 // pred_fallthru
          _
        // Predicated region
        $region21: #{tpu_custom_call.1} parent=15 // pred_check
          %p195 = pneg %p81
        $region22: #{tpu_custom_call.1} parent=15 // pred_check_branch
          %197 = sbr.rel (%p195) target = $region24
        $region23: #{tpu_custom_call.1} parent=15 // pred_region
          %s198 = sand.u32 %s71, 1
          %s199 = scalar_lea.sflag [#allocation6], %s198
          %s200 = sand.u32 %s71, 1
          %s201 = smul.addr %s200, 32
          %s202 = scalar_lea.vmem [#allocation5], %s201
          %s203 = smul.u32 %s22, 2
          %s204 = sadd.s32 %s203, %s23
          %s205 = smul.u32 2, %s204
          %s206 = ssub.s32 7, %s205
          %p207 = scmp.lt.s32.totalorder %s206, 2
          %s208 = scalar_select %p207, %s206, 2
          %s209 = smul.u32 8, %s208
          %s210 = smul.u32 %s209, 2
          %s211 = ssub.s32 32, %s210
          %s212 = sshll.u32 %s211, 4
          %213 = vsyncadd %s199, %s212
          %p214 = scmp.ne.s32.totalorder 0, %s210
          %s215 = smul.addr %s205, 2
          %s216 = smul.addr %s215, 8
          %s217 = scalar_lea.hbm %s1, %s216
          %s218 = smul.u32 16, %s208
          %s219 = sshll.u32 %s217, 4
          %s220 = int_to_ptr.hbm [resolvable:$true] %s219
          %s221 = sshll.u32 %s202, 4
          %s222 = int_to_ptr.vmem [resolvable:$true] %s221
          %s223 = sshll.u32 %s218, 4
          %227 = dma.hbm_to_vmem [thread:$0]  (%p214), %s220, %s223, %s222, %s199, 256, 256, 16
        $region24: #{tpu_custom_call.1} parent=15 // pred_fallthru
          _
        // Predicated region
        $region25: #{tpu_custom_call.1} parent=15 // pred_check
          %p228 = pneg %p111
        $region26: #{tpu_custom_call.1} parent=15 // pred_check_branch
          %230 = sbr.rel (%p228) target = $region28
        $region27: #{tpu_custom_call.1} parent=15 // pred_region
          %s231 = smul.u32 %s22, 2
          %s232 = sadd.s32 %s231, %s23
          %s233 = smul.u32 2, %s232
          %s234 = ssub.s32 7, %s233
          %p235 = scmp.lt.s32.totalorder %s234, 2
          %s236 = scalar_select %p235, %s234, 2
          %s237 = smul.u32 8, %s236
          %p238 = scmp.lt.s32.totalorder %s233, 6
          %s239 = scalar_select %p238, %s233, 6
          %s240 = smul.addr %s239, 8
          %s241 = scalar_lea.vmem %s2, %s240
          %s242 = smul.u32 %s22, 2
          %s243 = sadd.s32 %s242, %s23
          %s244 = smul.u32 2, %s243
          %s245 = ssub.s32 7, %s244
          %p246 = scmp.lt.s32.totalorder %s245, 2
          %s247 = scalar_select %p246, %s245, 2
          %s248 = smul.u32 8, %s247
        $region28: #{tpu_custom_call.1} parent=15 // pred_fallthru
          _
      $region16: #{tpu_custom_call.1} parent=5 // pred_fallthru
        _
      %p249 = scmp.le.s32.totalorder 1, %s15
      %p250 = scmp.lt.s32.totalorder %s15, 5
      %p251 = pnand %p249, %p250
      %p252 = pneg %p251
      // Predicated region
      $region29: #{tpu_custom_call.1} parent=5 // pred_check
        _
      $region30: #{tpu_custom_call.1} parent=5 // pred_check_branch
        %254 = sbr.rel (%p251) target = $region32
      $region31: #{tpu_custom_call.1} parent=5 // pred_region
        %s255 = ssub.s32 %s15, 1
        %s256 = sand.u32 %s44, 1
        %s257 = scalar_lea.sflag [#allocation4], %s256
        %s258 = sand.u32 %s44, 1
        %s259 = smul.addr %s258, 32
        %s260 = scalar_lea.vmem [#allocation3], %s259
        // Predicated region
        $region33: #{tpu_custom_call.1} parent=31 // pred_check
          %p261 = pneg %p57
        $region34: #{tpu_custom_call.1} parent=31 // pred_check_branch
          %263 = sbr.rel (%p261) target = $region36
        $region35: #{tpu_custom_call.1} parent=31 // pred_region
          %265 = dma.done %s257, 512
        $region36: #{tpu_custom_call.1} parent=31 // pred_fallthru
          _
        %s266 = sand.u32 %s74, 1
        %s267 = scalar_lea.sflag [#allocation6], %s266
        %s268 = sand.u32 %s74, 1
        %s269 = smul.addr %s268, 32
        %s270 = scalar_lea.vmem [#allocation5], %s269
        // Predicated region
        $region37: #{tpu_custom_call.1} parent=31 // pred_check
          %p271 = pneg %p87
        $region38: #{tpu_custom_call.1} parent=31 // pred_check_branch
          %273 = sbr.rel (%p271) target = $region40
        $region39: #{tpu_custom_call.1} parent=31 // pred_region
          %275 = dma.done %s267, 512
        $region40: #{tpu_custom_call.1} parent=31 // pred_fallthru
          _
        %s276 = sand.u32 %s44, 1
        %s277 = scalar_lea.sflag [#allocation4], %s276
        %s278 = sand.u32 %s44, 1
        %s279 = smul.addr %s278, 32
        %s280 = scalar_lea.vmem [#allocation3], %s279
        %p281 = pneg %p57
        %p282 = pneg %p54
        %s283 = sand.u32 %s74, 1
        %s284 = scalar_lea.sflag [#allocation6], %s283
        %s285 = sand.u32 %s74, 1
        %s286 = smul.addr %s285, 32
        %s287 = scalar_lea.vmem [#allocation5], %s286
        %p288 = pneg %p87
        %p289 = pneg %p84
        %s290 = smul.u32 %s24, 2
        %s291 = sadd.s32 %s290, %s25
        %s292 = smul.u32 2, %s291
        %s293 = ssub.s32 7, %s292
        %p294 = scmp.lt.s32.totalorder %s293, 2
        %s295 = scalar_select %p294, %s293, 2
        %s296 = smul.u32 8, %s295
        %p297 = scmp.lt.s32.totalorder %s292, 6
        %s298 = scalar_select %p297, %s292, 6
        %s299 = smul.addr %s298, 8
        %s300 = scalar_lea.vmem %s2, %s299
        %p301 = pneg %p117
        %p302 = pneg %p114
        %p303 = pneg %p143
        %p304 = pneg %p140
        %p305 = scmp.lt.s32.totalorder %s24, 1
        %s306 = scalar_select %p305, %s24, 1
        %s307 = scalar_lea.vmem %s3, %s306
        %s308 = smul.u32 %s24, 2
        %s309 = sadd.s32 %s308, %s25
        %s310 = smul.u32 2, %s309
        %s311 = ssub.s32 7, %s310
        %p312 = scmp.lt.s32.totalorder %s311, 2
        %s313 = scalar_select %p312, %s311, 2
        %s314 = smul.u32 8, %s313
        %s315 = smul.u32 %s314, 2
        %s316 = smul.u32 %s24, 2
        %s317 = sadd.s32 %s316, %s25
        %s318 = smul.u32 2, %s317
        %s319 = ssub.s32 7, %s318
        %p320 = scmp.lt.s32.totalorder %s319, 2
        %s321 = scalar_select %p320, %s319, 2
        %s322 = smul.u32 8, %s321
        %s323 = smul.u32 %s322, 2
        %s324 = smul.u32 %s24, 2
        %s325 = sadd.s32 %s324, %s25
        %s326 = smul.u32 2, %s325
        %s327 = ssub.s32 7, %s326
        %p328 = scmp.lt.s32.totalorder %s327, 2
        %s329 = scalar_select %p328, %s327, 2
        %s330 = smul.u32 8, %s329
        %p331 = scmp.lt.s32.totalorder %s326, 6
        %s332 = scalar_select %p331, %s326, 6
        %s333 = smul.addr %s332, 8
        %s334 = scalar_lea.vmem %s2, %s333
        %s335 = smul.u32 %s24, 2
        %s336 = sadd.s32 %s335, %s25
        %s337 = smul.u32 2, %s336
        %s338 = ssub.s32 7, %s337
        %p339 = scmp.lt.s32.totalorder %s338, 2
        %s340 = scalar_select %p339, %s338, 2
        %s341 = smul.u32 8, %s340
        %p342 = scmp.lt.s32.totalorder %s24, 1
        %s343 = scalar_select %p342, %s24, 1
        %s344 = scalar_lea.vmem %s3, %s343
        %p345 = scmp.eq.s32.totalorder %s25, 0
        // Predicated region
        $region41: #{tpu_custom_call.1} parent=31 // pred_check
          %p346 = pneg %p345
        $region42: #{tpu_custom_call.1} parent=31 // pred_check_branch
          %348 = sbr.rel (%p346) target = $region44
        $region43: #{tpu_custom_call.1} parent=31 // pred_region
          %vm349 = vcmask 0
          %350 = vst.msk [vmem:[#allocation2] sm:$0x1] %vm349, 0.0
        $region44: #{tpu_custom_call.1} parent=31 // pred_fallthru
          _
        %v351 = vld [vmem:[%s260] sm:$0xff]
        %v352 = vld [vmem:[%s260 + $0x8] sm:$0xff]
        %v353 = vld [vmem:[%s260 + $0x10] sm:$0xff]
        %v354 = vld [vmem:[%s260 + $0x18] sm:$0xff]
        %v355 = vld [vmem:[%s270] sm:$0xff]
        %v356 = vld [vmem:[%s270 + $0x8] sm:$0xff]
        %v357 = vld [vmem:[%s270 + $0x10] sm:$0xff]
        %v358 = vld [vmem:[%s270 + $0x18] sm:$0xff]
        %v359 = vld [vmem:[%s334] sm:$0xff]
        %v360 = vld [vmem:[%s334 + $0x8] sm:$0xff]
        %v361 = vmul.f32 %v351, %v355
        %v362 = vmul.f32 %v352, %v356
        %v363 = vmul.f32 %v353, %v357
        %v364 = vmul.f32 %v354, %v358
        %v365 = vadd.f32 %v361, %v362
        %366 = vadd.xlane.f32.xlu0 %v365
        %v367 = vpop.xlane.xlu0 %366
        %v368 = vadd.f32 %v363, %v364
        %369 = vadd.xlane.f32.xlu0 %v368
        %v370 = vpop.xlane.xlu0 %369
        %v371 = vmul.f32 %v351, %v351
        %v372 = vmul.f32 %v352, %v352
        %v373 = vmul.f32 %v353, %v353
        %v374 = vmul.f32 %v354, %v354
        %v375 = vadd.f32 %v371, %v372
        %376 = vadd.xlane.f32.xlu0 %v375
        %v377 = vpop.xlane.xlu0 %376
        %v378 = vadd.f32 %v373, %v374
        %379 = vadd.xlane.f32.xlu0 %v378
        %v380 = vpop.xlane.xlu0 %379
        %v381 = vmul.f32 %v355, %v355
        %v382 = vmul.f32 %v356, %v356
        %v383 = vmul.f32 %v357, %v357
        %v384 = vmul.f32 %v358, %v358
        %v385 = vadd.f32 %v381, %v382
        %386 = vadd.xlane.f32.xlu0 %v385
        %v387 = vpop.xlane.xlu0 %386
        %v388 = vadd.f32 %v383, %v384
        %389 = vadd.xlane.f32.xlu0 %v388
        %v390 = vpop.xlane.xlu0 %389
        %v391 = vmul.f32 %v377, %v387
        %v392 = vmul.f32 %v380, %v390
        %v393 = vmax.f32 %v391, 1e-16
        %v394 = vmax.f32 %v392, 1e-16
        %v395 = vrsqrt.pop %v393
        %v396 = vmul.f32 %v395, %v393
        %v397 = vmul.f32 %v396, %v395
        %v398 = vmul.f32 0.5, %v397
        %v399 = vsub.f32 1.5, %v398
        %v400 = vmul.f32 %v395, %v399
        %vm401 = vweird.f32 %v393
        %vm402 = vweird.f32 %v395
        %vm403 = vmor %vm401, %vm402
        %v404 = vsel %vm403, %v395, %v400
        %v405 = vrsqrt.pop %v394
        %v406 = vmul.f32 %v405, %v394
        %v407 = vmul.f32 %v406, %v405
        %v408 = vmul.f32 0.5, %v407
        %v409 = vsub.f32 1.5, %v408
        %v410 = vmul.f32 %v405, %v409
        %vm411 = vweird.f32 %v394
        %vm412 = vweird.f32 %v405
        %vm413 = vmor %vm411, %vm412
        %v414 = vsel %vm413, %v405, %v410
        %v415 = vmul.f32 %v367, %v404
        %v416 = vmul.f32 %v370, %v414
        %v417 = vsub.f32 %v415, %v359
        %v418 = vsub.f32 %v416, %v360
        %v419 = vmul.f32 %v417, %v417
        %v420 = vmul.f32 %v418, %v418
        %s421 = smul.u32 %s24, 2
        %s422 = sadd.s32 %s421, %s25
        %s423 = smul.u32 %s422, 16
        %v424 = vlaneseq
        %v425 = vshrl.u32 %v424, 7
        %v426 = vadd.s32 %v425, 8
        %v427 = vstv %s423
        %v428 = vadd.s32 %v427, %v425
        %v429 = vadd.s32 %v427, %v426
        %vm430 = vcmp.lt.s32.totalorder %v428, 50
        %vm431 = vcmp.lt.s32.totalorder %v429, 50
        %v432 = vsel %vm430, %v419, 0.0
        %v433 = vsel %vm431, %v420, 0.0
        %v434 = vld [vmem:[#allocation2] sm:$0x1]
        %vm435 = vcmask 7168
        %v436 = vsel %vm435, %v432, 0.0
        %v437 = vsel %vm435, %v433, 0.0
        %v438 = vadd.f32 %v436, %v437
        %439 = vadd.xlane.f32.xlu0 %v438
        %v440 = vpop.xlane.xlu0 %439
        %v441 = vrot.slane %v440, 4
        %v442 = vadd.f32 %v440, %v441
        %v443 = vrot.slane %v442, 2
        %v444 = vadd.f32 %v442, %v443
        %v445 = vrot.slane %v444, 1
        %v446 = vadd.f32 %v444, %v445
        %s447 = vtos %v446
        %v448 = vstv %s447
        %v449 = vadd.f32 %v434, %v448
        %vm450 = vcmask 0
        %451 = vst.msk [vmem:[#allocation2] sm:$0x1] %vm450, %v449
        %p452 = scmp.eq.s32.totalorder %s25, 1
        // Predicated region
        $region45: #{tpu_custom_call.1} parent=31 // pred_check
          %p453 = pneg %p452
        $region46: #{tpu_custom_call.1} parent=31 // pred_check_branch
          %455 = sbr.rel (%p453) target = $region48
        $region47: #{tpu_custom_call.1} parent=31 // pred_region
          %v456 = vld [vmem:[#allocation2] sm:$0x1]
          %457 = vst.msk [vmem:[%s344] sm:$0x1] %vm450, %v456
        $region48: #{tpu_custom_call.1} parent=31 // pred_fallthru
          _
        %p458 = scmp.lt.s32.totalorder %s24, 1
        %s459 = scalar_select %p458, %s24, 1
        %s460 = scalar_lea.vmem %s3, %s459
        // Predicated region
        $region49: #{tpu_custom_call.1} parent=31 // pred_check
          %p461 = pneg %p140
        $region50: #{tpu_custom_call.1} parent=31 // pred_check_branch
          %463 = sbr.rel (%p461) target = $region52
        $region51: #{tpu_custom_call.1} parent=31 // pred_region
          _
        $region52: #{tpu_custom_call.1} parent=31 // pred_fallthru
          _
      $region32: #{tpu_custom_call.1} parent=5 // pred_fallthru
        _
      %p464 = scmp.le.s32.totalorder 2, %s15
      // Predicated region
      $region53: #{tpu_custom_call.1} parent=5 // pred_check
        %p465 = pneg %p464
      $region54: #{tpu_custom_call.1} parent=5 // pred_check_branch
        %467 = sbr.rel (%p465) target = $region56
      $region55: #{tpu_custom_call.1} parent=5 // pred_region
        %s468 = ssub.s32 %s15, 2
        // Predicated region
        $region57: #{tpu_custom_call.1} parent=55 // pred_check
          %p469 = pneg %p146
        $region58: #{tpu_custom_call.1} parent=55 // pred_check_branch
          %471 = sbr.rel (%p469) target = $region60
        $region59: #{tpu_custom_call.1} parent=55 // pred_region
          %p472 = scmp.lt.s32.totalorder %s26, 1
          %s473 = scalar_select %p472, %s26, 1
          %s474 = scalar_lea.vmem %s3, %s473
        $region60: #{tpu_custom_call.1} parent=55 // pred_fallthru
          _
      $region56: #{tpu_custom_call.1} parent=5 // pred_fallthru
        _
    $region6: #{tpu_custom_call.1} parent=1 // loop_footer
      %s19 = sadd.s32 1, %s15
    $region7: #{tpu_custom_call.1} parent=1 // loop_footer_branch
      %14 = sbr.rel target = $region3
    $region8: #{tpu_custom_call.1} parent=1 // loop_exit
      _
    %475 = vsyncpa [#allocation4], 1
    %s476 = scalar_lea.sflag [#allocation4], 1
    %477 = vsyncpa %s476, 1
    %478 = vsyncpa [#allocation6], 1
    %s479 = scalar_lea.sflag [#allocation6], 1
    %480 = vsyncpa %s479, 1

</llo_original>
